<compile_context>
chip_gen: v7x
topology: tpu7x:2x2x1
jax: 0.10.0
libtpu: 0.0.40
codegen_flags: <defaults>
</compile_context>

<pallas_src>
import functools

import jax
import jax.numpy as jnp
import numpy as np
from jax.experimental import pallas as pl
from jax.experimental.pallas import tpu as pltpu


# ----------------------------------------------------------------------------
# Weight helper: PyTorch ConvTranspose2d weight (Cin, Cout, KH, KW) -> the
# (Cout, KH*KW*Cin) matrix of the equivalent direct convolution (spatially
# flipped kernel), contraction index ordered (ky, kx, ci).
# ----------------------------------------------------------------------------
def _flatten_convtranspose_weight(w):
    cin, cout, kh, kw = w.shape
    wf = w[:, :, ::-1, ::-1]
    return jnp.transpose(wf, (1, 2, 3, 0)).reshape(cout, kh * kw * cin)


# ----------------------------------------------------------------------------
# Fused kernel: every layer builds its im2col in-kernel from the live
# (C, B_blk*L) activation slab with one XLU roll + combined boundary mask per
# tap, stored at static offsets into a persistent VMEM scratch, then does one
# (Cout, KH*KW*C) @ (KH*KW*C, B_blk*L) MXU matmul + bias + LeakyReLU.
# The roll is circular over the whole slab; any read that would cross an image
# (or slab) boundary is exactly an out-of-bounds tap and the mask zeroes it.
# ----------------------------------------------------------------------------
def _decoding_fused_kernel(u_ref, w0_ref, b0_ref, mask_ref, *rest,
                           n_rep, KH, KW, ph, pw, Wd, Ltot, Cin, Cout,
                           last_decoding_layer, negative_slope):
    if n_rep > 1:
        wr_ref, br_ref, o_ref, col_ref = rest
    else:
        o_ref, col_ref = rest

    def lrelu(a):
        return jnp.where(a >= 0, a, negative_slope * a)

    def build_col(act, C):
        # im2col of the live (C, Ltot) activation: one roll + mask per tap.
        t = 0
        for ky in range(KH):
            for kx in range(KW):
                off = (ky - ph) * Wd + (kx - pw)          # flat read offset
                if off == 0:
                    v = act
                else:
                    v = pltpu.roll(act, shift=(-off) % Ltot, axis=1)
                col_ref[t * C:(t + 1) * C, :] = v * mask_ref[t]
                t += 1
        return col_ref[pl.ds(0, KH * KW * C), :]

    # ---- layer 0 (transposed conv; stride handled by the zero-upsampled input u) ----
    col = build_col(u_ref[...], Cin)
    act = jnp.dot(w0_ref[...], col, preferred_element_type=jnp.float32) + b0_ref[...]
    if not (last_decoding_layer and n_rep == 1):
        act = lrelu(act)

    # ---- layers 1..n_rep-1 (stride-1 'same' transposed convs) ----
    for r in range(1, n_rep):
        col = build_col(act, Cout)
        act = (jnp.dot(wr_ref[r - 1], col, preferred_element_type=jnp.float32)
               + br_ref[r - 1])
        if not (last_decoding_layer and r == n_rep - 1):
            act = lrelu(act)

    o_ref[...] = act.astype(o_ref.dtype)


# ----------------------------------------------------------------------------
# DecodingLayer forward: NCHW in / NCHW out, all n_rep layers in one pallas_call.
# ----------------------------------------------------------------------------
def decoding_layer_forward(x, params, *, n_rep, desired_outshape,
                           kernel_size=(3, 3), pool_factor=(2, 2),
                           dilation=(1, 1), padding=(1, 1), using_bn=False,
                           last_decoding_layer=False, negative_slope=0.01,
                           max_images_per_block=32):
    if using_bn:
        raise NotImplementedError("using_bn=True (BatchNorm2d) is not implemented")
    if tuple(dilation) != (1, 1):
        raise NotImplementedError("dilation != (1, 1) is not implemented")

    KH, KW = kernel_size
    ph, pw = padding
    sh, sw = pool_factor
    N, Cin, H, W = x.shape
    Hd, Wd = desired_outshape
    Cout = params[0][0].shape[1]
    L = Hd * Wd

    # layer-0 output_padding so the produced size matches desired_outshape
    oph = Hd - ((H - 1) * sh - 2 * ph + (KH - 1) + 1)
    opw = Wd - ((W - 1) * sw - 2 * pw + (KW - 1) + 1)
    if not (0 <= oph < sh and 0 <= opw < sw):
        raise ValueError(f"invalid output_padding {(oph, opw)} for stride {(sh, sw)}")
    if n_rep > 1 and (KH != 2 * ph + 1 or KW != 2 * pw + 1):
        raise ValueError("stride-1 decoding layers require kernel_size == 2*padding + 1")
    low_h, low_w = KH - 1 - 2 * ph, KW - 1 - 2 * pw
    if low_h < 0 or low_w < 0:
        raise NotImplementedError("requires 2*padding <= kernel_size - 1")

    # ---- batch blocking: fold B_blk images into the lane axis -------------
    # Keep >= 2 grid steps when N >= 2 (v7x has 2 TensorCores); cap the block
    # so double-buffered inputs + scratch stay far below v5e's 16 MiB scoped VMEM.
    if N >= 2:
        b_blk = max(1, min(max_images_per_block, -(-N // 2)))
    else:
        b_blk = 1
    if (b_blk * L) % 128 != 0:
        b_blk = N                     # full-extent block (exempt from lane rule)
    n_steps = -(-N // b_blk)
    n_pad = n_steps * b_blk
    Ltot = b_blk * L

    xf = x.astype(jnp.float32)

    # ---- tiny XLA prologue: zero-upsample x straight onto the output grid ----
    # u[n, ci, oy, ox] = x[n, ci, iy, ix] at oy = low_h + sh*iy, ox = low_w + sw*ix,
    # zeros elsewhere.  Layer 0's taps then read u with the same shift+mask
    # machinery as the stride-1 layers (everything outside the window is zero).
    u = jax.lax.pad(xf, jnp.array(0.0, xf.dtype),
                    ((0, 0, 0), (0, 0, 0),
                     (low_h, oph, sh - 1), (low_w, opw, sw - 1)))
    assert u.shape[2] == Hd and u.shape[3] == Wd, u.shape
    u = u.reshape(N, Cin, L)
    if n_pad != N:
        u = jnp.pad(u, ((0, n_pad - N), (0, 0), (0, 0)))
    # lane-dense slab: (Cin, n_pad*L), batch folded into the lane axis
    u_slab = jnp.transpose(u, (1, 0, 2)).reshape(Cin, n_pad * L)

    # ---- flattened weights / biases ----
    w0m = _flatten_convtranspose_weight(params[0][0].astype(jnp.float32))
    b0 = params[0][1].astype(jnp.float32).reshape(Cout, 1)

    # ---- per-tap combined (vertical & horizontal) boundary masks, shared by
    # all layers, tiled over the images of one block ----
    oy = np.arange(L, dtype=np.int64) // Wd
    ox = np.arange(L, dtype=np.int64) % Wd
    m_list = []
    for ky in range(KH):
        for kx in range(KW):
            my = (oy + ky - ph >= 0) & (oy + ky - ph < Hd)
            mx = (ox + kx - pw >= 0) & (ox + kx - pw < Wd)
            m_list.append((my & mx).astype(np.float32))
    masks = jnp.asarray(np.tile(np.stack(m_list, 0).reshape(KH * KW, 1, L),
                                (1, 1, b_blk)))

    inputs = [u_slab, w0m, b0, masks]
    in_specs = [
        pl.BlockSpec((Cin, Ltot), lambda n: (0, n)),
        pl.BlockSpec((Cout, KH * KW * Cin), lambda n: (0, 0)),
        pl.BlockSpec((Cout, 1), lambda n: (0, 0)),
        pl.BlockSpec((KH * KW, 1, Ltot), lambda n: (0, 0, 0)),
    ]

    if n_rep > 1:
        wrm = jnp.stack(
            [_flatten_convtranspose_weight(params[r][0].astype(jnp.float32))
             for r in range(1, n_rep)], axis=0)          # (n_rep-1, Cout, KH*KW*Cout)
        brm = jnp.stack(
            [params[r][1].astype(jnp.float32).reshape(Cout, 1)
             for r in range(1, n_rep)], axis=0)          # (n_rep-1, Cout, 1)
        inputs += [wrm, brm]
        in_specs += [
            pl.BlockSpec((n_rep - 1, Cout, KH * KW * Cout), lambda n: (0, 0, 0)),
            pl.BlockSpec((n_rep - 1, Cout, 1), lambda n: (0, 0, 0)),
        ]

    kernel = functools.partial(
        _decoding_fused_kernel, n_rep=n_rep, KH=KH, KW=KW, ph=ph, pw=pw,
        Wd=Wd, Ltot=Ltot, Cin=Cin, Cout=Cout,
        last_decoding_layer=last_decoding_layer, negative_slope=negative_slope)

    out_slab = pl.pallas_call(
        kernel,
        out_shape=jax.ShapeDtypeStruct((Cout, n_pad * L), jnp.float32),
        grid_spec=pltpu.PrefetchScalarGridSpec(
            num_scalar_prefetch=0,
            grid=(n_steps,),
            in_specs=in_specs,
            out_specs=pl.BlockSpec((Cout, Ltot), lambda n: (0, n)),
            scratch_shapes=[pltpu.VMEM((KH * KW * max(Cin, Cout), Ltot),
                                       jnp.float32)],
        ),
        compiler_params=pltpu.CompilerParams(dimension_semantics=("parallel",)),
    )(*inputs)

    # lane-dense slab (Cout, n_pad*L) -> NCHW (tiny layout fixup in the wrapper)
    out = out_slab.reshape(Cout, n_pad, Hd, Wd).transpose(1, 0, 2, 3)
    return out[:N]


# ----------------------------------------------------------------------------
# Pure-JAX reference (lax.conv_general_dilated) for correctness check
# ----------------------------------------------------------------------------
def _output_padding(in_size, desired, stride, pad, dil, k):
    produced = (in_size - 1) * stride - 2 * pad + dil * (k - 1) + 1
    return desired - produced


def _ref_conv_transpose(x, w, b, stride, padding, output_padding):
    KH, KW = w.shape[2], w.shape[3]
    wf = jnp.transpose(w[:, :, ::-1, ::-1], (1, 0, 2, 3))  # (Cout, Cin, KH, KW)
    pad = [(KH - 1 - padding[0], KH - 1 - padding[0] + output_padding[0]),
           (KW - 1 - padding[1], KW - 1 - padding[1] + output_padding[1])]
    y = jax.lax.conv_general_dilated(
        x, wf, window_strides=(1, 1), padding=pad,
        lhs_dilation=stride, rhs_dilation=(1, 1),
        dimension_numbers=('NCHW', 'OIHW', 'NCHW'))
    return y + b.reshape(1, -1, 1, 1)


def _ref_forward(x, params, n_rep, desired_outshape, pool_factor, padding,
                 dilation, kernel_size, last_decoding_layer):
    Hd, Wd = desired_outshape
    for i in range(n_rep):
        w, b = params[i]
        stride = pool_factor if i == 0 else (1, 1)
        oph = _output_padding(x.shape[2], Hd, stride[0], padding[0], dilation[0], kernel_size[0])
        opw = _output_padding(x.shape[3], Wd, stride[1], padding[1], dilation[1], kernel_size[1])
        x = _ref_conv_transpose(x, w, b, stride, padding, (oph, opw))
        if not (last_decoding_layer and i == n_rep - 1):
            x = jnp.where(x >= 0, x, 0.01 * x)
    return x


if __name__ == "__main__":
    # Module config: n_rep=2, in_channels=4, out_channels=4,
    # desired_outshape=(16,16), kernel=(3,3), pool_factor=(2,2), padding=(1,1),
    # using_bn=False, last_decoding_layer=False.  Input is (N=2, 4, 8, 8).
    n_rep = 2
    in_channels, out_channels = 4, 4
    desired_outshape = (16, 16)
    N, Hin, Win = 2, 8, 8

    key = jax.random.PRNGKey(0)
    k_x, k_w1, k_b1, k_w2, k_b2 = jax.random.split(key, 5)

    x = jax.random.normal(k_x, (N, in_channels, Hin, Win), jnp.float32)
    # synthetic parameters (shapes per nn.ConvTranspose2d: (Cin, Cout, KH, KW))
    params = [
        (0.1 * jax.random.normal(k_w1, (in_channels, out_channels, 3, 3), jnp.float32),
         0.1 * jax.random.normal(k_b1, (out_channels,), jnp.float32)),
        (0.1 * jax.random.normal(k_w2, (out_channels, out_channels, 3, 3), jnp.float32),
         0.1 * jax.random.normal(k_b2, (out_channels,), jnp.float32)),
    ]

    out = decoding_layer_forward(
        x, params, n_rep=n_rep, desired_outshape=desired_outshape,
        kernel_size=(3, 3), pool_factor=(2, 2), dilation=(1, 1), padding=(1, 1),
        using_bn=False, last_decoding_layer=False)
    out = jax.block_until_ready(out)

    ref = _ref_forward(x, params, n_rep, desired_outshape, (2, 2), (1, 1),
                       (1, 1), (3, 3), False)
    ref = jax.block_until_ready(ref)

    assert out.shape == (N, out_channels, *desired_outshape), out.shape
    np.testing.assert_allclose(np.asarray(out), np.asarray(ref), rtol=1e-4, atol=1e-4)
    print("KERNEL_OK")
</pallas_src>

<mosaic_0001>
module attributes {stable_mosaic.version = 11 : i64} {
  func.func @_decoding_fused_kernel(%arg0: i32, %arg1: memref<4x256xf32, #tpu.memory_space<vmem>>, %arg2: memref<4x36xf32, #tpu.memory_space<vmem>>, %arg3: memref<4x1xf32, #tpu.memory_space<vmem>>, %arg4: memref<9x1x256xf32, #tpu.memory_space<vmem>>, %arg5: memref<1x4x36xf32, #tpu.memory_space<vmem>>, %arg6: memref<1x4x1xf32, #tpu.memory_space<vmem>>, %arg7: memref<4x256xf32, #tpu.memory_space<vmem>>, %arg8: memref<36x256xf32, #tpu.memory_space<vmem>>) attributes {dimension_semantics = [#tpu.dimension_semantics<parallel>], iteration_bounds = array<i64: 2>, scalar_prefetch = 0 : i64, scratch_operands = 1 : i64, tpu.core_type = #tpu.core_type<tc>, window_params = [{transform_indices = @transform_0, window_bounds = array<i64: 4, 256>}, {pipeline_mode = #tpu.pipeline_mode<synchronous>, transform_indices = @transform_1, window_bounds = array<i64: 4, 36>}, {pipeline_mode = #tpu.pipeline_mode<synchronous>, transform_indices = @transform_2, window_bounds = array<i64: 4, 1>}, {pipeline_mode = #tpu.pipeline_mode<synchronous>, transform_indices = @transform_3, window_bounds = array<i64: 9, 1, 256>}, {pipeline_mode = #tpu.pipeline_mode<synchronous>, transform_indices = @transform_4, window_bounds = array<i64: 1, 4, 36>}, {pipeline_mode = #tpu.pipeline_mode<synchronous>, transform_indices = @transform_5, window_bounds = array<i64: 1, 4, 1>}, {transform_indices = @transform_6, window_bounds = array<i64: 4, 256>}]} {
    %c0 = arith.constant 0 : index
    %c0_0 = arith.constant 0 : index
    %0 = vector.load %arg1[%c0, %c0_0] : memref<4x256xf32, #tpu.memory_space<vmem>>, vector<4x256xf32>
    %c17_i32 = arith.constant 17 : i32
    %1 = tpu.dynamic_rotate %0 by %c17_i32 dim 1 : vector<4x256xf32>, i32 -> vector<4x256xf32>
    %c0_1 = arith.constant 0 : index
    %c0_2 = arith.constant 0 : index
    %c0_3 = arith.constant 0 : index
    %2 = vector.load %arg4[%c0_1, %c0_2, %c0_3] : memref<9x1x256xf32, #tpu.memory_space<vmem>>, vector<1x1x256xf32>
    %3 = vector.shape_cast %2 : vector<1x1x256xf32> to vector<1x256xf32>
    %4 = vector.broadcast %3 : vector<1x256xf32> to vector<4x256xf32>
    %5 = arith.mulf %1, %4 : vector<4x256xf32>
    %c0_4 = arith.constant 0 : index
    %c0_5 = arith.constant 0 : index
    %6 = vector.load %arg8[%c0_4, %c0_5] : memref<36x256xf32, #tpu.memory_space<vmem>>, vector<4x256xf32>
    tpu.vector_store %arg8[%c0_4, %c0_5], %5 {strides = array<i32>} : memref<36x256xf32, #tpu.memory_space<vmem>>, vector<4x256xf32>,
    %c16_i32 = arith.constant 16 : i32
    %7 = tpu.dynamic_rotate %0 by %c16_i32 dim 1 : vector<4x256xf32>, i32 -> vector<4x256xf32>
    %c1 = arith.constant 1 : index
    %c0_6 = arith.constant 0 : index
    %c0_7 = arith.constant 0 : index
    %8 = vector.load %arg4[%c1, %c0_6, %c0_7] : memref<9x1x256xf32, #tpu.memory_space<vmem>>, vector<1x1x256xf32>
    %9 = vector.shape_cast %8 : vector<1x1x256xf32> to vector<1x256xf32>
    %10 = vector.broadcast %9 : vector<1x256xf32> to vector<4x256xf32>
    %11 = arith.mulf %7, %10 : vector<4x256xf32>
    %c4 = arith.constant 4 : index
    %c0_8 = arith.constant 0 : index
    %12 = vector.load %arg8[%c4, %c0_8] : memref<36x256xf32, #tpu.memory_space<vmem>>, vector<4x256xf32>
    tpu.vector_store %arg8[%c4, %c0_8], %11 {strides = array<i32>} : memref<36x256xf32, #tpu.memory_space<vmem>>, vector<4x256xf32>,
    %c15_i32 = arith.constant 15 : i32
    %13 = tpu.dynamic_rotate %0 by %c15_i32 dim 1 : vector<4x256xf32>, i32 -> vector<4x256xf32>
    %c2 = arith.constant 2 : index
    %c0_9 = arith.constant 0 : index
    %c0_10 = arith.constant 0 : index
    %14 = vector.load %arg4[%c2, %c0_9, %c0_10] : memref<9x1x256xf32, #tpu.memory_space<vmem>>, vector<1x1x256xf32>
    %15 = vector.shape_cast %14 : vector<1x1x256xf32> to vector<1x256xf32>
    %16 = vector.broadcast %15 : vector<1x256xf32> to vector<4x256xf32>
    %17 = arith.mulf %13, %16 : vector<4x256xf32>
    %c8 = arith.constant 8 : index
    %c0_11 = arith.constant 0 : index
    %18 = vector.load %arg8[%c8, %c0_11] : memref<36x256xf32, #tpu.memory_space<vmem>>, vector<4x256xf32>
    tpu.vector_store %arg8[%c8, %c0_11], %17 {strides = array<i32>} : memref<36x256xf32, #tpu.memory_space<vmem>>, vector<4x256xf32>,
    %c1_i32 = arith.constant 1 : i32
    %19 = tpu.dynamic_rotate %0 by %c1_i32 dim 1 : vector<4x256xf32>, i32 -> vector<4x256xf32>
    %c3 = arith.constant 3 : index
    %c0_12 = arith.constant 0 : index
    %c0_13 = arith.constant 0 : index
    %20 = vector.load %arg4[%c3, %c0_12, %c0_13] : memref<9x1x256xf32, #tpu.memory_space<vmem>>, vector<1x1x256xf32>
    %21 = vector.shape_cast %20 : vector<1x1x256xf32> to vector<1x256xf32>
    %22 = vector.broadcast %21 : vector<1x256xf32> to vector<4x256xf32>
    %23 = arith.mulf %19, %22 : vector<4x256xf32>
    %c12 = arith.constant 12 : index
    %c0_14 = arith.constant 0 : index
    %24 = vector.load %arg8[%c12, %c0_14] : memref<36x256xf32, #tpu.memory_space<vmem>>, vector<4x256xf32>
    tpu.vector_store %arg8[%c12, %c0_14], %23 {strides = array<i32>} : memref<36x256xf32, #tpu.memory_space<vmem>>, vector<4x256xf32>,
    %c4_15 = arith.constant 4 : index
    %c0_16 = arith.constant 0 : index
    %c0_17 = arith.constant 0 : index
    %25 = vector.load %arg4[%c4_15, %c0_16, %c0_17] : memref<9x1x256xf32, #tpu.memory_space<vmem>>, vector<1x1x256xf32>
    %26 = vector.shape_cast %25 : vector<1x1x256xf32> to vector<1x256xf32>
    %27 = vector.broadcast %26 : vector<1x256xf32> to vector<4x256xf32>
    %28 = arith.mulf %0, %27 : vector<4x256xf32>
    %c16 = arith.constant 16 : index
    %c0_18 = arith.constant 0 : index
    %29 = vector.load %arg8[%c16, %c0_18] : memref<36x256xf32, #tpu.memory_space<vmem>>, vector<4x256xf32>
    tpu.vector_store %arg8[%c16, %c0_18], %28 {strides = array<i32>} : memref<36x256xf32, #tpu.memory_space<vmem>>, vector<4x256xf32>,
    %c255_i32 = arith.constant 255 : i32
    %30 = tpu.dynamic_rotate %0 by %c255_i32 dim 1 : vector<4x256xf32>, i32 -> vector<4x256xf32>
    %c5 = arith.constant 5 : index
    %c0_19 = arith.constant 0 : index
    %c0_20 = arith.constant 0 : index
    %31 = vector.load %arg4[%c5, %c0_19, %c0_20] : memref<9x1x256xf32, #tpu.memory_space<vmem>>, vector<1x1x256xf32>
    %32 = vector.shape_cast %31 : vector<1x1x256xf32> to vector<1x256xf32>
    %33 = vector.broadcast %32 : vector<1x256xf32> to vector<4x256xf32>
    %34 = arith.mulf %30, %33 : vector<4x256xf32>
    %c20 = arith.constant 20 : index
    %c0_21 = arith.constant 0 : index
    %35 = vector.load %arg8[%c20, %c0_21] : memref<36x256xf32, #tpu.memory_space<vmem>>, vector<4x256xf32>
    tpu.vector_store %arg8[%c20, %c0_21], %34 {strides = array<i32>} : memref<36x256xf32, #tpu.memory_space<vmem>>, vector<4x256xf32>,
    %c241_i32 = arith.constant 241 : i32
    %36 = tpu.dynamic_rotate %0 by %c241_i32 dim 1 : vector<4x256xf32>, i32 -> vector<4x256xf32>
    %c6 = arith.constant 6 : index
    %c0_22 = arith.constant 0 : index
    %c0_23 = arith.constant 0 : index
    %37 = vector.load %arg4[%c6, %c0_22, %c0_23] : memref<9x1x256xf32, #tpu.memory_space<vmem>>, vector<1x1x256xf32>
    %38 = vector.shape_cast %37 : vector<1x1x256xf32> to vector<1x256xf32>
    %39 = vector.broadcast %38 : vector<1x256xf32> to vector<4x256xf32>
    %40 = arith.mulf %36, %39 : vector<4x256xf32>
    %c24 = arith.constant 24 : index
    %c0_24 = arith.constant 0 : index
    %41 = vector.load %arg8[%c24, %c0_24] : memref<36x256xf32, #tpu.memory_space<vmem>>, vector<4x256xf32>
    tpu.vector_store %arg8[%c24, %c0_24], %40 {strides = array<i32>} : memref<36x256xf32, #tpu.memory_space<vmem>>, vector<4x256xf32>,
    %c240_i32 = arith.constant 240 : i32
    %42 = tpu.dynamic_rotate %0 by %c240_i32 dim 1 : vector<4x256xf32>, i32 -> vector<4x256xf32>
    %c7 = arith.constant 7 : index
    %c0_25 = arith.constant 0 : index
    %c0_26 = arith.constant 0 : index
    %43 = vector.load %arg4[%c7, %c0_25, %c0_26] : memref<9x1x256xf32, #tpu.memory_space<vmem>>, vector<1x1x256xf32>
    %44 = vector.shape_cast %43 : vector<1x1x256xf32> to vector<1x256xf32>
    %45 = vector.broadcast %44 : vector<1x256xf32> to vector<4x256xf32>
    %46 = arith.mulf %42, %45 : vector<4x256xf32>
    %c28 = arith.constant 28 : index
    %c0_27 = arith.constant 0 : index
    %47 = vector.load %arg8[%c28, %c0_27] : memref<36x256xf32, #tpu.memory_space<vmem>>, vector<4x256xf32>
    tpu.vector_store %arg8[%c28, %c0_27], %46 {strides = array<i32>} : memref<36x256xf32, #tpu.memory_space<vmem>>, vector<4x256xf32>,
    %c239_i32 = arith.constant 239 : i32
    %48 = tpu.dynamic_rotate %0 by %c239_i32 dim 1 : vector<4x256xf32>, i32 -> vector<4x256xf32>
    %c8_28 = arith.constant 8 : index
    %c0_29 = arith.constant 0 : index
    %c0_30 = arith.constant 0 : index
    %49 = vector.load %arg4[%c8_28, %c0_29, %c0_30] : memref<9x1x256xf32, #tpu.memory_space<vmem>>, vector<1x1x256xf32>
    %50 = vector.shape_cast %49 : vector<1x1x256xf32> to vector<1x256xf32>
    %51 = vector.broadcast %50 : vector<1x256xf32> to vector<4x256xf32>
    %52 = arith.mulf %48, %51 : vector<4x256xf32>
    %c32 = arith.constant 32 : index
    %c0_31 = arith.constant 0 : index
    %53 = vector.load %arg8[%c32, %c0_31] : memref<36x256xf32, #tpu.memory_space<vmem>>, vector<4x256xf32>
    tpu.vector_store %arg8[%c32, %c0_31], %52 {strides = array<i32>} : memref<36x256xf32, #tpu.memory_space<vmem>>, vector<4x256xf32>,
    %c0_32 = arith.constant 0 : index
    %c0_33 = arith.constant 0 : index
    %54 = vector.load %arg8[%c0_32, %c0_33] : memref<36x256xf32, #tpu.memory_space<vmem>>, vector<36x256xf32>
    %c0_34 = arith.constant 0 : index
    %c0_35 = arith.constant 0 : index
    %55 = vector.load %arg2[%c0_34, %c0_35] : memref<4x36xf32, #tpu.memory_space<vmem>>, vector<4x36xf32>
    %cst = arith.constant dense<0.000000e+00> : vector<4x256xf32>
    %56 = tpu.matmul %55, %54, %cst {dimension_numbers = #tpu.dot_dimension_numbers<[1], [0], [0], [1], [0, 0, 1, 1], [], []>} : vector<4x36xf32>, vector<36x256xf32>, vector<4x256xf32> -> vector<4x256xf32>
    %c0_36 = arith.constant 0 : index
    %c0_37 = arith.constant 0 : index
    %57 = vector.load %arg3[%c0_36, %c0_37] : memref<4x1xf32, #tpu.memory_space<vmem>>, vector<4x1xf32>
    %58 = vector.broadcast %57 : vector<4x1xf32> to vector<4x256xf32>
    %59 = arith.addf %56, %58 : vector<4x256xf32>
    %cst_38 = arith.constant 0.000000e+00 : f32
    %60 = vector.broadcast %cst_38 : f32 to vector<4x256xf32>
    %61 = arith.cmpf oge, %59, %60 : vector<4x256xf32>
    %cst_39 = arith.constant 0.00999999977 : f32
    %62 = vector.broadcast %cst_39 : f32 to vector<4x256xf32>
    %63 = arith.mulf %62, %59 : vector<4x256xf32>
    %64 = arith.select %61, %59, %63 : vector<4x256xi1>, vector<4x256xf32>
    %c17_i32_40 = arith.constant 17 : i32
    %65 = tpu.dynamic_rotate %64 by %c17_i32_40 dim 1 : vector<4x256xf32>, i32 -> vector<4x256xf32>
    %c0_41 = arith.constant 0 : index
    %c0_42 = arith.constant 0 : index
    %c0_43 = arith.constant 0 : index
    %66 = vector.load %arg4[%c0_41, %c0_42, %c0_43] : memref<9x1x256xf32, #tpu.memory_space<vmem>>, vector<1x1x256xf32>
    %67 = vector.shape_cast %66 : vector<1x1x256xf32> to vector<1x256xf32>
    %68 = vector.broadcast %67 : vector<1x256xf32> to vector<4x256xf32>
    %69 = arith.mulf %65, %68 : vector<4x256xf32>
    %c0_44 = arith.constant 0 : index
    %c0_45 = arith.constant 0 : index
    %70 = vector.load %arg8[%c0_44, %c0_45] : memref<36x256xf32, #tpu.memory_space<vmem>>, vector<4x256xf32>
    tpu.vector_store %arg8[%c0_44, %c0_45], %69 {strides = array<i32>} : memref<36x256xf32, #tpu.memory_space<vmem>>, vector<4x256xf32>,
    %c16_i32_46 = arith.constant 16 : i32
    %71 = tpu.dynamic_rotate %64 by %c16_i32_46 dim 1 : vector<4x256xf32>, i32 -> vector<4x256xf32>
    %c1_47 = arith.constant 1 : index
    %c0_48 = arith.constant 0 : index
    %c0_49 = arith.constant 0 : index
    %72 = vector.load %arg4[%c1_47, %c0_48, %c0_49] : memref<9x1x256xf32, #tpu.memory_space<vmem>>, vector<1x1x256xf32>
    %73 = vector.shape_cast %72 : vector<1x1x256xf32> to vector<1x256xf32>
    %74 = vector.broadcast %73 : vector<1x256xf32> to vector<4x256xf32>
    %75 = arith.mulf %71, %74 : vector<4x256xf32>
    %c4_50 = arith.constant 4 : index
    %c0_51 = arith.constant 0 : index
    %76 = vector.load %arg8[%c4_50, %c0_51] : memref<36x256xf32, #tpu.memory_space<vmem>>, vector<4x256xf32>
    tpu.vector_store %arg8[%c4_50, %c0_51], %75 {strides = array<i32>} : memref<36x256xf32, #tpu.memory_space<vmem>>, vector<4x256xf32>,
    %c15_i32_52 = arith.constant 15 : i32
    %77 = tpu.dynamic_rotate %64 by %c15_i32_52 dim 1 : vector<4x256xf32>, i32 -> vector<4x256xf32>
    %c2_53 = arith.constant 2 : index
    %c0_54 = arith.constant 0 : index
    %c0_55 = arith.constant 0 : index
    %78 = vector.load %arg4[%c2_53, %c0_54, %c0_55] : memref<9x1x256xf32, #tpu.memory_space<vmem>>, vector<1x1x256xf32>
    %79 = vector.shape_cast %78 : vector<1x1x256xf32> to vector<1x256xf32>
    %80 = vector.broadcast %79 : vector<1x256xf32> to vector<4x256xf32>
    %81 = arith.mulf %77, %80 : vector<4x256xf32>
    %c8_56 = arith.constant 8 : index
    %c0_57 = arith.constant 0 : index
    %82 = vector.load %arg8[%c8_56, %c0_57] : memref<36x256xf32, #tpu.memory_space<vmem>>, vector<4x256xf32>
    tpu.vector_store %arg8[%c8_56, %c0_57], %81 {strides = array<i32>} : memref<36x256xf32, #tpu.memory_space<vmem>>, vector<4x256xf32>,
    %c1_i32_58 = arith.constant 1 : i32
    %83 = tpu.dynamic_rotate %64 by %c1_i32_58 dim 1 : vector<4x256xf32>, i32 -> vector<4x256xf32>
    %c3_59 = arith.constant 3 : index
    %c0_60 = arith.constant 0 : index
    %c0_61 = arith.constant 0 : index
    %84 = vector.load %arg4[%c3_59, %c0_60, %c0_61] : memref<9x1x256xf32, #tpu.memory_space<vmem>>, vector<1x1x256xf32>
    %85 = vector.shape_cast %84 : vector<1x1x256xf32> to vector<1x256xf32>
    %86 = vector.broadcast %85 : vector<1x256xf32> to vector<4x256xf32>
    %87 = arith.mulf %83, %86 : vector<4x256xf32>
    %c12_62 = arith.constant 12 : index
    %c0_63 = arith.constant 0 : index
    %88 = vector.load %arg8[%c12_62, %c0_63] : memref<36x256xf32, #tpu.memory_space<vmem>>, vector<4x256xf32>
    tpu.vector_store %arg8[%c12_62, %c0_63], %87 {strides = array<i32>} : memref<36x256xf32, #tpu.memory_space<vmem>>, vector<4x256xf32>,
    %c4_64 = arith.constant 4 : index
    %c0_65 = arith.constant 0 : index
    %c0_66 = arith.constant 0 : index
    %89 = vector.load %arg4[%c4_64, %c0_65, %c0_66] : memref<9x1x256xf32, #tpu.memory_space<vmem>>, vector<1x1x256xf32>
    %90 = vector.shape_cast %89 : vector<1x1x256xf32> to vector<1x256xf32>
    %91 = vector.broadcast %90 : vector<1x256xf32> to vector<4x256xf32>
    %92 = arith.mulf %64, %91 : vector<4x256xf32>
    %c16_67 = arith.constant 16 : index
    %c0_68 = arith.constant 0 : index
    %93 = vector.load %arg8[%c16_67, %c0_68] : memref<36x256xf32, #tpu.memory_space<vmem>>, vector<4x256xf32>
    tpu.vector_store %arg8[%c16_67, %c0_68], %92 {strides = array<i32>} : memref<36x256xf32, #tpu.memory_space<vmem>>, vector<4x256xf32>,
    %c255_i32_69 = arith.constant 255 : i32
    %94 = tpu.dynamic_rotate %64 by %c255_i32_69 dim 1 : vector<4x256xf32>, i32 -> vector<4x256xf32>
    %c5_70 = arith.constant 5 : index
    %c0_71 = arith.constant 0 : index
    %c0_72 = arith.constant 0 : index
    %95 = vector.load %arg4[%c5_70, %c0_71, %c0_72] : memref<9x1x256xf32, #tpu.memory_space<vmem>>, vector<1x1x256xf32>
    %96 = vector.shape_cast %95 : vector<1x1x256xf32> to vector<1x256xf32>
    %97 = vector.broadcast %96 : vector<1x256xf32> to vector<4x256xf32>
    %98 = arith.mulf %94, %97 : vector<4x256xf32>
    %c20_73 = arith.constant 20 : index
    %c0_74 = arith.constant 0 : index
    %99 = vector.load %arg8[%c20_73, %c0_74] : memref<36x256xf32, #tpu.memory_space<vmem>>, vector<4x256xf32>
    tpu.vector_store %arg8[%c20_73, %c0_74], %98 {strides = array<i32>} : memref<36x256xf32, #tpu.memory_space<vmem>>, vector<4x256xf32>,
    %c241_i32_75 = arith.constant 241 : i32
    %100 = tpu.dynamic_rotate %64 by %c241_i32_75 dim 1 : vector<4x256xf32>, i32 -> vector<4x256xf32>
    %c6_76 = arith.constant 6 : index
    %c0_77 = arith.constant 0 : index
    %c0_78 = arith.constant 0 : index
    %101 = vector.load %arg4[%c6_76, %c0_77, %c0_78] : memref<9x1x256xf32, #tpu.memory_space<vmem>>, vector<1x1x256xf32>
    %102 = vector.shape_cast %101 : vector<1x1x256xf32> to vector<1x256xf32>
    %103 = vector.broadcast %102 : vector<1x256xf32> to vector<4x256xf32>
    %104 = arith.mulf %100, %103 : vector<4x256xf32>
    %c24_79 = arith.constant 24 : index
    %c0_80 = arith.constant 0 : index
    %105 = vector.load %arg8[%c24_79, %c0_80] : memref<36x256xf32, #tpu.memory_space<vmem>>, vector<4x256xf32>
    tpu.vector_store %arg8[%c24_79, %c0_80], %104 {strides = array<i32>} : memref<36x256xf32, #tpu.memory_space<vmem>>, vector<4x256xf32>,
    %c240_i32_81 = arith.constant 240 : i32
    %106 = tpu.dynamic_rotate %64 by %c240_i32_81 dim 1 : vector<4x256xf32>, i32 -> vector<4x256xf32>
    %c7_82 = arith.constant 7 : index
    %c0_83 = arith.constant 0 : index
    %c0_84 = arith.constant 0 : index
    %107 = vector.load %arg4[%c7_82, %c0_83, %c0_84] : memref<9x1x256xf32, #tpu.memory_space<vmem>>, vector<1x1x256xf32>
    %108 = vector.shape_cast %107 : vector<1x1x256xf32> to vector<1x256xf32>
    %109 = vector.broadcast %108 : vector<1x256xf32> to vector<4x256xf32>
    %110 = arith.mulf %106, %109 : vector<4x256xf32>
    %c28_85 = arith.constant 28 : index
    %c0_86 = arith.constant 0 : index
    %111 = vector.load %arg8[%c28_85, %c0_86] : memref<36x256xf32, #tpu.memory_space<vmem>>, vector<4x256xf32>
    tpu.vector_store %arg8[%c28_85, %c0_86], %110 {strides = array<i32>} : memref<36x256xf32, #tpu.memory_space<vmem>>, vector<4x256xf32>,
    %c239_i32_87 = arith.constant 239 : i32
    %112 = tpu.dynamic_rotate %64 by %c239_i32_87 dim 1 : vector<4x256xf32>, i32 -> vector<4x256xf32>
    %c8_88 = arith.constant 8 : index
    %c0_89 = arith.constant 0 : index
    %c0_90 = arith.constant 0 : index
    %113 = vector.load %arg4[%c8_88, %c0_89, %c0_90] : memref<9x1x256xf32, #tpu.memory_space<vmem>>, vector<1x1x256xf32>
    %114 = vector.shape_cast %113 : vector<1x1x256xf32> to vector<1x256xf32>
    %115 = vector.broadcast %114 : vector<1x256xf32> to vector<4x256xf32>
    %116 = arith.mulf %112, %115 : vector<4x256xf32>
    %c32_91 = arith.constant 32 : index
    %c0_92 = arith.constant 0 : index
    %117 = vector.load %arg8[%c32_91, %c0_92] : memref<36x256xf32, #tpu.memory_space<vmem>>, vector<4x256xf32>
    tpu.vector_store %arg8[%c32_91, %c0_92], %116 {strides = array<i32>} : memref<36x256xf32, #tpu.memory_space<vmem>>, vector<4x256xf32>,
    %c0_93 = arith.constant 0 : index
    %c0_94 = arith.constant 0 : index
    %118 = vector.load %arg8[%c0_93, %c0_94] : memref<36x256xf32, #tpu.memory_space<vmem>>, vector<36x256xf32>
    %c0_95 = arith.constant 0 : index
    %c0_96 = arith.constant 0 : index
    %c0_97 = arith.constant 0 : index
    %119 = vector.load %arg5[%c0_95, %c0_96, %c0_97] : memref<1x4x36xf32, #tpu.memory_space<vmem>>, vector<1x4x36xf32>
    %120 = vector.shape_cast %119 : vector<1x4x36xf32> to vector<4x36xf32>
    %cst_98 = arith.constant dense<0.000000e+00> : vector<4x256xf32>
    %121 = tpu.matmul %120, %118, %cst_98 {dimension_numbers = #tpu.dot_dimension_numbers<[1], [0], [0], [1], [0, 0, 1, 1], [], []>} : vector<4x36xf32>, vector<36x256xf32>, vector<4x256xf32> -> vector<4x256xf32>
    %c0_99 = arith.constant 0 : index
    %c0_100 = arith.constant 0 : index
    %c0_101 = arith.constant 0 : index
    %122 = vector.load %arg6[%c0_99, %c0_100, %c0_101] : memref<1x4x1xf32, #tpu.memory_space<vmem>>, vector<1x4x1xf32>
    %123 = vector.shape_cast %122 : vector<1x4x1xf32> to vector<4x1xf32>
    %124 = vector.broadcast %123 : vector<4x1xf32> to vector<4x256xf32>
    %125 = arith.addf %121, %124 : vector<4x256xf32>
    %cst_102 = arith.constant 0.000000e+00 : f32
    %126 = vector.broadcast %cst_102 : f32 to vector<4x256xf32>
    %127 = arith.cmpf oge, %125, %126 : vector<4x256xf32>
    %cst_103 = arith.constant 0.00999999977 : f32
    %128 = vector.broadcast %cst_103 : f32 to vector<4x256xf32>
    %129 = arith.mulf %128, %125 : vector<4x256xf32>
    %130 = arith.select %127, %125, %129 : vector<4x256xi1>, vector<4x256xf32>
    %c0_104 = arith.constant 0 : index
    %c0_105 = arith.constant 0 : index
    %131 = vector.load %arg7[%c0_104, %c0_105] : memref<4x256xf32, #tpu.memory_space<vmem>>, vector<4x256xf32>
    tpu.vector_store %arg7[%c0_104, %c0_105], %130 {strides = array<i32>} : memref<4x256xf32, #tpu.memory_space<vmem>>, vector<4x256xf32>,
    return
  }
  func.func @transform_0(%arg0: i32) -> (i32, i32) {
    %c0_i32 = arith.constant 0 : i32
    %c0_i32_0 = arith.constant 0 : i32
    return %c0_i32, %arg0 : i32, i32
  }
  func.func @transform_1(%arg0: i32) -> (i32, i32) {
    %c0_i32 = arith.constant 0 : i32
    %c0_i32_0 = arith.constant 0 : i32
    %c0_i32_1 = arith.constant 0 : i32
    return %c0_i32, %c0_i32_0 : i32, i32
  }
  func.func @transform_2(%arg0: i32) -> (i32, i32) {
    %c0_i32 = arith.constant 0 : i32
    %c0_i32_0 = arith.constant 0 : i32
    %c0_i32_1 = arith.constant 0 : i32
    return %c0_i32, %c0_i32_0 : i32, i32
  }
  func.func @transform_3(%arg0: i32) -> (i32, i32, i32) {
    %c0_i32 = arith.constant 0 : i32
    %c0_i32_0 = arith.constant 0 : i32
    %c0_i32_1 = arith.constant 0 : i32
    %c0_i32_2 = arith.constant 0 : i32
    return %c0_i32, %c0_i32_0, %c0_i32_1 : i32, i32, i32
  }
  func.func @transform_4(%arg0: i32) -> (i32, i32, i32) {
    %c0_i32 = arith.constant 0 : i32
    %c0_i32_0 = arith.constant 0 : i32
    %c0_i32_1 = arith.constant 0 : i32
    %c0_i32_2 = arith.constant 0 : i32
    return %c0_i32, %c0_i32_0, %c0_i32_1 : i32, i32, i32
  }
  func.func @transform_5(%arg0: i32) -> (i32, i32, i32) {
    %c0_i32 = arith.constant 0 : i32
    %c0_i32_0 = arith.constant 0 : i32
    %c0_i32_1 = arith.constant 0 : i32
    %c0_i32_2 = arith.constant 0 : i32
    return %c0_i32, %c0_i32_0, %c0_i32_1 : i32, i32, i32
  }
  func.func @transform_6(%arg0: i32) -> (i32, i32) {
    %c0_i32 = arith.constant 0 : i32
    %c0_i32_0 = arith.constant 0 : i32
    return %c0_i32, %arg0 : i32, i32
  }
}

</mosaic_0001>

<llo_original>
// kernel: tpu_custom_call.1
$region0: #{tpu_custom_call.1}
  #allocation0 [shape = 'u32[]', space=smem, size = 0x4, offset = 0x4, fixed_abs, tag = 'smem constant byte address 0x4 - core index']
  #allocation1 [shape = 'u32[144,128]{1,0:T(1,128)}', space=vmem, size = 0x12000, scoped, tag = 'internal scratch']
  #allocation2 [shape = 'f32[36,256]{1,0:T(8,128)}', space=vmem, size = 0xa000, scoped, tag = 'scratch operand']
  %s0 = inlined_call_operand.hbm [shape: f32[4,512], index: 0, kind: input, shape index: {}]
  %s1 = inlined_call_operand.hbm [shape: f32[4,36], index: 1, kind: input, shape index: {}]
  %s2 = inlined_call_operand.vmem [shape: f32[4,1], index: 2, kind: input, shape index: {}]
  %s3 = inlined_call_operand.vmem [shape: f32[9,1,256], index: 3, kind: input, shape index: {}]
  %s4 = inlined_call_operand.vmem [shape: f32[1,4,36], index: 4, kind: input, shape index: {}]
  %s5 = inlined_call_operand.vmem [shape: f32[1,4,1], index: 5, kind: input, shape index: {}]
  %s6 = inlined_call_operand.hbm [shape: f32[4,512], index: 6, kind: output, shape index: {}]
  %s7 = sld [smem:[#allocation0]]
  $region65: #{tpu_custom_call.1} parent=0
    _
  %s9 = ssub.s32 1, %s7
  %s10 = scalar_select 0, %s9, %s7
  $region1: #{tpu_custom_call.1} parent=0
    #allocation3 [shape = 'u8[8192]{0}', space=vmem, size = 0x2000, scoped, tag = 'input window, operand 0']
    #allocation4 [shape = 's32[2]{0}', space=sflag, size = 0x8, scoped, tag = 'scoped memory for tpu_custom_call.1']
    #allocation5 [shape = 's32[2]{0}', space=sflag, size = 0x8, scoped, tag = 'scoped memory for tpu_custom_call.1']
    #allocation6 [shape = 'u8[2048]{0}', space=vmem, size = 0x800, scoped, tag = 'input window, operand 1, single buffered']
    #allocation7 [shape = 's32[1]{0}', space=sflag, size = 0x4, scoped, tag = 'scoped memory for tpu_custom_call.1']
    #allocation8 [shape = 'u8[8192]{0}', space=vmem, size = 0x2000, scoped, tag = 'output window, operand 0']
    %11 = vsyncpa [#allocation4], 0
    %s12 = scalar_lea.sflag [#allocation4], 1
    %13 = vsyncpa %s12, 0
    %14 = vsyncpa [#allocation7], 0
    %15 = vsyncpa [#allocation5], 0
    %s16 = scalar_lea.sflag [#allocation5], 1
    %17 = vsyncpa %s16, 0
    loop: start=0, step=1, limit=4
    $region2: #{tpu_custom_call.1} parent=1 // loop_pre_header
      _
    $region3: #{tpu_custom_call.1} parent=1 // loop_header
      %s19 = sphi 0, %s23
      %p20 = scmp.ge.s32.totalorder %s19, 4
      %s29 = sphi 0, %s31
      %s32 = sphi 0, %s29
      %s33 = sphi 0, %s32
      %s49 = sphi 0, %s33
      %s53 = sphi 0, %s53
      %s55 = sphi 0, %s53
      %s56 = sphi 0, %s55
      %s70 = sphi 0, %s56
      %s74 = sphi 0, %s74
      %s76 = sphi 0, %s74
      %s77 = sphi 0, %s76
      %s91 = sphi 0, %s77
      %s95 = sphi 0, %s95
      %s97 = sphi 0, %s95
      %s98 = sphi 0, %s97
      %s112 = sphi 0, %s98
      %s116 = sphi 0, %s116
      %s118 = sphi 0, %s116
      %s119 = sphi 0, %s118
      %s133 = sphi 0, %s119
      %s137 = sphi 0, %s137
      %s139 = sphi 0, %s137
      %s140 = sphi 0, %s139
      %s154 = sphi 0, %s140
      %s160 = sphi 0, %s162
      %s163 = sphi 0, %s160
      %s164 = sphi 0, %s163
      %s180 = sphi 0, %s164
    $region4: #{tpu_custom_call.1} parent=1 // loop_header_branch
      %22 = sbr.rel (%p20) target = $region8
    $region5: #{tpu_custom_call.1} parent=1 // loop_body
      %s24 = ssub.s32 %s19, 1
      %s25 = ssub.s32 %s19, 2
      %s26 = sadd.s32 %s19, 1
      %s27 = ssub.s32 %s19, %s26
      %p28 = scmp.eq.s32.totalorder %s27, 0
      %s30 = sadd.s32 %s29, 1
      %s31 = scalar_select %p28, %s29, %s30
      %p34 = pneg %p28
      %p35 = scmp.eq.s32.totalorder %s19, 1
      %p36 = por %p34, %p35
      %p37 = scmp.ne.s32.totalorder %s29, %s32
      %p38 = scmp.eq.s32.totalorder %s19, 0
      %p39 = por %p37, %p38
      %p40 = scmp.ne.s32.totalorder %s29, %s32
      %p41 = scmp.eq.s32.totalorder %s24, 1
      %p42 = por %p40, %p41
      %p43 = scmp.ne.s32.totalorder %s32, %s33
      %p44 = scmp.eq.s32.totalorder %s24, 0
      %p45 = por %p43, %p44
      %p46 = scmp.ne.s32.totalorder %s32, %s33
      %p47 = scmp.eq.s32.totalorder %s25, 1
      %p48 = por %p46, %p47
      %p50 = scmp.ne.s32.totalorder %s33, %s49
      %p51 = scmp.eq.s32.totalorder %s25, 0
      %p52 = por %p50, %p51
      %s54 = sadd.s32 %s53, 1
      %p57 = scmp.eq.s32.totalorder %s19, 1
      %p58 = scmp.ne.s32.totalorder %s53, %s55
      %p59 = scmp.eq.s32.totalorder %s19, 0
      %p60 = por %p58, %p59
      %p61 = scmp.ne.s32.totalorder %s53, %s55
      %p62 = scmp.eq.s32.totalorder %s24, 1
      %p63 = por %p61, %p62
      %p64 = scmp.ne.s32.totalorder %s55, %s56
      %p65 = scmp.eq.s32.totalorder %s24, 0
      %p66 = por %p64, %p65
      %p67 = scmp.ne.s32.totalorder %s55, %s56
      %p68 = scmp.eq.s32.totalorder %s25, 1
      %p69 = por %p67, %p68
      %p71 = scmp.ne.s32.totalorder %s56, %s70
      %p72 = scmp.eq.s32.totalorder %s25, 0
      %p73 = por %p71, %p72
      %s75 = sadd.s32 %s74, 1
      %p78 = scmp.eq.s32.totalorder %s19, 1
      %p79 = scmp.ne.s32.totalorder %s74, %s76
      %p80 = scmp.eq.s32.totalorder %s19, 0
      %p81 = por %p79, %p80
      %p82 = scmp.ne.s32.totalorder %s74, %s76
      %p83 = scmp.eq.s32.totalorder %s24, 1
      %p84 = por %p82, %p83
      %p85 = scmp.ne.s32.totalorder %s76, %s77
      %p86 = scmp.eq.s32.totalorder %s24, 0
      %p87 = por %p85, %p86
      %p88 = scmp.ne.s32.totalorder %s76, %s77
      %p89 = scmp.eq.s32.totalorder %s25, 1
      %p90 = por %p88, %p89
      %p92 = scmp.ne.s32.totalorder %s77, %s91
      %p93 = scmp.eq.s32.totalorder %s25, 0
      %p94 = por %p92, %p93
      %s96 = sadd.s32 %s95, 1
      %p99 = scmp.eq.s32.totalorder %s19, 1
      %p100 = scmp.ne.s32.totalorder %s95, %s97
      %p101 = scmp.eq.s32.totalorder %s19, 0
      %p102 = por %p100, %p101
      %p103 = scmp.ne.s32.totalorder %s95, %s97
      %p104 = scmp.eq.s32.totalorder %s24, 1
      %p105 = por %p103, %p104
      %p106 = scmp.ne.s32.totalorder %s97, %s98
      %p107 = scmp.eq.s32.totalorder %s24, 0
      %p108 = por %p106, %p107
      %p109 = scmp.ne.s32.totalorder %s97, %s98
      %p110 = scmp.eq.s32.totalorder %s25, 1
      %p111 = por %p109, %p110
      %p113 = scmp.ne.s32.totalorder %s98, %s112
      %p114 = scmp.eq.s32.totalorder %s25, 0
      %p115 = por %p113, %p114
      %s117 = sadd.s32 %s116, 1
      %p120 = scmp.eq.s32.totalorder %s19, 1
      %p121 = scmp.ne.s32.totalorder %s116, %s118
      %p122 = scmp.eq.s32.totalorder %s19, 0
      %p123 = por %p121, %p122
      %p124 = scmp.ne.s32.totalorder %s116, %s118
      %p125 = scmp.eq.s32.totalorder %s24, 1
      %p126 = por %p124, %p125
      %p127 = scmp.ne.s32.totalorder %s118, %s119
      %p128 = scmp.eq.s32.totalorder %s24, 0
      %p129 = por %p127, %p128
      %p130 = scmp.ne.s32.totalorder %s118, %s119
      %p131 = scmp.eq.s32.totalorder %s25, 1
      %p132 = por %p130, %p131
      %p134 = scmp.ne.s32.totalorder %s119, %s133
      %p135 = scmp.eq.s32.totalorder %s25, 0
      %p136 = por %p134, %p135
      %s138 = sadd.s32 %s137, 1
      %p141 = scmp.eq.s32.totalorder %s19, 1
      %p142 = scmp.ne.s32.totalorder %s137, %s139
      %p143 = scmp.eq.s32.totalorder %s19, 0
      %p144 = por %p142, %p143
      %p145 = scmp.ne.s32.totalorder %s137, %s139
      %p146 = scmp.eq.s32.totalorder %s24, 1
      %p147 = por %p145, %p146
      %p148 = scmp.ne.s32.totalorder %s139, %s140
      %p149 = scmp.eq.s32.totalorder %s24, 0
      %p150 = por %p148, %p149
      %p151 = scmp.ne.s32.totalorder %s139, %s140
      %p152 = scmp.eq.s32.totalorder %s25, 1
      %p153 = por %p151, %p152
      %p155 = scmp.ne.s32.totalorder %s140, %s154
      %p156 = scmp.eq.s32.totalorder %s25, 0
      %p157 = por %p155, %p156
      %s158 = ssub.s32 %s19, %s26
      %p159 = scmp.eq.s32.totalorder %s158, 0
      %s161 = sadd.s32 %s160, 1
      %s162 = scalar_select %p159, %s160, %s161
      %p165 = pneg %p159
      %p166 = scmp.eq.s32.totalorder %s19, 1
      %p167 = por %p165, %p166
      %p168 = scmp.ne.s32.totalorder %s160, %s163
      %p169 = scmp.eq.s32.totalorder %s19, 0
      %p170 = por %p168, %p169
      %p171 = scmp.ne.s32.totalorder %s160, %s163
      %p172 = scmp.eq.s32.totalorder %s24, 1
      %p173 = por %p171, %p172
      %p174 = scmp.ne.s32.totalorder %s163, %s164
      %p175 = scmp.eq.s32.totalorder %s24, 0
      %p176 = por %p174, %p175
      %p177 = scmp.ne.s32.totalorder %s163, %s164
      %p178 = scmp.eq.s32.totalorder %s25, 1
      %p179 = por %p177, %p178
      %p181 = scmp.ne.s32.totalorder %s164, %s180
      %p182 = scmp.eq.s32.totalorder %s25, 0
      %p183 = por %p181, %p182
      %p184 = scmp.le.s32.totalorder 1, %s19
      %p185 = scmp.lt.s32.totalorder %s19, 3
      %p186 = pnand %p184, %p185
      %p187 = pneg %p186
      // Predicated region
      $region9: #{tpu_custom_call.1} parent=5 // pred_check
        _
      $region10: #{tpu_custom_call.1} parent=5 // pred_check_branch
        %189 = sbr.rel (%p186) target = $region12
      $region11: #{tpu_custom_call.1} parent=5 // pred_region
        %s190 = ssub.s32 %s19, 1
        // Predicated region
        $region13: #{tpu_custom_call.1} parent=11 // pred_check
          %p191 = pneg %p66
        $region14: #{tpu_custom_call.1} parent=11 // pred_check_branch
          %193 = sbr.rel (%p191) target = $region16
        $region15: #{tpu_custom_call.1} parent=11 // pred_region
          %s195 = ssub.s32 64, 64
          %196 = vsyncadd [#allocation7], %s195
          %s198 = sshll.u32 [#allocation6], 4
          %s199 = int_to_ptr.vmem [resolvable:$true] %s198
          %201 = dma.hbm_to_vmem [thread:$0]  %s1, 64, %s199, [#allocation7]
        $region16: #{tpu_custom_call.1} parent=11 // pred_fallthru
          _
        // Predicated region
        $region17: #{tpu_custom_call.1} parent=11 // pred_check
          %p202 = pneg %p87
        $region18: #{tpu_custom_call.1} parent=11 // pred_check_branch
          %204 = sbr.rel (%p202) target = $region20
        $region19: #{tpu_custom_call.1} parent=11 // pred_region
          _
        $region20: #{tpu_custom_call.1} parent=11 // pred_fallthru
          _
        // Predicated region
        $region21: #{tpu_custom_call.1} parent=11 // pred_check
          %p205 = pneg %p108
        $region22: #{tpu_custom_call.1} parent=11 // pred_check_branch
          %207 = sbr.rel (%p205) target = $region24
        $region23: #{tpu_custom_call.1} parent=11 // pred_region
          _
        $region24: #{tpu_custom_call.1} parent=11 // pred_fallthru
          _
        // Predicated region
        $region25: #{tpu_custom_call.1} parent=11 // pred_check
          %p208 = pneg %p129
        $region26: #{tpu_custom_call.1} parent=11 // pred_check_branch
          %210 = sbr.rel (%p208) target = $region28
        $region27: #{tpu_custom_call.1} parent=11 // pred_region
          _
        $region28: #{tpu_custom_call.1} parent=11 // pred_fallthru
          _
        // Predicated region
        $region29: #{tpu_custom_call.1} parent=11 // pred_check
          %p211 = pneg %p150
        $region30: #{tpu_custom_call.1} parent=11 // pred_check_branch
          %213 = sbr.rel (%p211) target = $region32
        $region31: #{tpu_custom_call.1} parent=11 // pred_region
          _
        $region32: #{tpu_custom_call.1} parent=11 // pred_fallthru
          _
      $region12: #{tpu_custom_call.1} parent=5 // pred_fallthru
        _
      %p214 = scmp.lt.s32.totalorder %s19, 2
      // Predicated region
      $region33: #{tpu_custom_call.1} parent=5 // pred_check
        %p215 = pneg %p214
      $region34: #{tpu_custom_call.1} parent=5 // pred_check_branch
        %217 = sbr.rel (%p215) target = $region36
      $region35: #{tpu_custom_call.1} parent=5 // pred_region
        // Predicated region
        $region37: #{tpu_custom_call.1} parent=35 // pred_check
          %p218 = pneg %p39
        $region38: #{tpu_custom_call.1} parent=35 // pred_check_branch
          %220 = sbr.rel (%p218) target = $region40
        $region39: #{tpu_custom_call.1} parent=35 // pred_region
          %s221 = sand.u32 %s29, 1
          %s222 = scalar_lea.sflag [#allocation4], %s221
          %s223 = sand.u32 %s29, 1
          %s224 = smul.addr %s223, 8
          %s225 = scalar_lea.vmem [#allocation3], %s224
          %s226 = smul.u32 2, %s19
          %s228 = ssub.s32 128, 128
          %229 = vsyncadd %s222, %s228
          %s230 = smul.addr %s226, 64
          %s231 = scalar_lea.hbm %s0, %s230
          %s233 = sshll.u32 %s225, 4
          %s234 = int_to_ptr.vmem [resolvable:$true] %s233
          %236 = dma.hbm_to_vmem [thread:$0]  %s231, 128, %s234, %s222
        $region40: #{tpu_custom_call.1} parent=35 // pred_fallthru
          _
      $region36: #{tpu_custom_call.1} parent=5 // pred_fallthru
        _
      %p237 = scmp.le.s32.totalorder 1, %s19
      %p238 = scmp.lt.s32.totalorder %s19, 3
      %p239 = pnand %p237, %p238
      %p240 = pneg %p239
      // Predicated region
      $region41: #{tpu_custom_call.1} parent=5 // pred_check
        _
      $region42: #{tpu_custom_call.1} parent=5 // pred_check_branch
        %242 = sbr.rel (%p239) target = $region44
      $region43: #{tpu_custom_call.1} parent=5 // pred_region
        %s243 = ssub.s32 %s19, 1
        %s244 = sand.u32 %s32, 1
        %s245 = scalar_lea.sflag [#allocation4], %s244
        %s246 = sand.u32 %s32, 1
        %s247 = smul.addr %s246, 8
        %s248 = scalar_lea.vmem [#allocation3], %s247
        // Predicated region
        $region45: #{tpu_custom_call.1} parent=43 // pred_check
          %p249 = pneg %p45
        $region46: #{tpu_custom_call.1} parent=43 // pred_check_branch
          %251 = sbr.rel (%p249) target = $region48
        $region47: #{tpu_custom_call.1} parent=43 // pred_region
          %252 = dma.done %s245, 128
        $region48: #{tpu_custom_call.1} parent=43 // pred_fallthru
          _
        // Predicated region
        $region49: #{tpu_custom_call.1} parent=43 // pred_check
          %p253 = pneg %p66
        $region50: #{tpu_custom_call.1} parent=43 // pred_check_branch
          %255 = sbr.rel (%p253) target = $region52
        $region51: #{tpu_custom_call.1} parent=43 // pred_region
          %256 = dma.done [#allocation7], 64
        $region52: #{tpu_custom_call.1} parent=43 // pred_fallthru
          _
        %s257 = sand.u32 %s32, 1
        %s258 = scalar_lea.sflag [#allocation4], %s257
        %s259 = sand.u32 %s32, 1
        %s260 = smul.addr %s259, 8
        %s261 = scalar_lea.vmem [#allocation3], %s260
        %p262 = pneg %p45
        %p263 = pneg %p42
        %p264 = pneg %p66
        %p265 = pneg %p63
        %p266 = pneg %p87
        %p267 = pneg %p84
        %p268 = pneg %p108
        %p269 = pneg %p105
        %p270 = pneg %p129
        %p271 = pneg %p126
        %p272 = pneg %p150
        %p273 = pneg %p147
        %p274 = pneg %p176
        %p275 = pneg %p173
        %s276 = sand.u32 %s163, 1
        %s277 = scalar_lea.sflag [#allocation5], %s276
        %s278 = sand.u32 %s163, 1
        %s279 = smul.addr %s278, 8
        %s280 = scalar_lea.vmem [#allocation8], %s279
        %s281 = smul.u32 2, %s24
        %s282 = smul.u32 2, %s24
        %v283 = vld [vmem:[%s248] sm:$0xff]
        %v285 = vcombine.high %v283, %v283
        %287 = vrot.lane.b32.xlu0 %v283, 17
        %v288 = vpop.permute.xlu0 %287
        %289 = vrot.lane.b32.xlu0 %v285, 17
        %v290 = vpop.permute.xlu0 %289
        %v291 = vlaneseq
        %v292 = vand.u32 %v291, 127
        %vm293 = vcmp.lt.s32.totalorder %v292, 17
        %v294 = vsel %vm293, %v288, %v290
        %v295 = vsel %vm293, %v290, %v288
        %v296 = vld [vmem:[%s3] sm:$0x3]
        %v298 = vlaneseq
        %v299 = vshrl.u32 %v298, 7
        %v300 = vsub.s32 0, %v299
        %v301 = vrot.slane %v296, %v300
        %v302 = vlaneseq
        %v303 = vshrl.u32 %v302, 7
        %v304 = vsub.s32 1, %v303
        %v305 = vrot.slane %v296, %v304
        %v308 = vmul.f32 %v295, %v301
        %v309 = vmul.f32 %v294, %v305
        %310 = vst [vmem:[#allocation2] sm:$0xf] %v308
        %311 = vst [vmem:[#allocation2 + $0x8] sm:$0xf] %v309
        %312 = vrot.lane.b32.xlu0 %v283, 16
        %v313 = vpop.permute.xlu0 %312
        %314 = vrot.lane.b32.xlu0 %v285, 16
        %v315 = vpop.permute.xlu0 %314
        %vm316 = vcmp.lt.s32.totalorder %v292, 16
        %v317 = vsel %vm316, %v313, %v315
        %v318 = vsel %vm316, %v315, %v313
        %s319 = scalar_lea.vmem %s3, 2
        %v320 = vld [vmem:[%s319] sm:$0x3]
        %v322 = vlaneseq
        %v323 = vshrl.u32 %v322, 7
        %v324 = vsub.s32 0, %v323
        %v325 = vrot.slane %v320, %v324
        %v326 = vlaneseq
        %v327 = vshrl.u32 %v326, 7
        %v328 = vsub.s32 1, %v327
        %v329 = vrot.slane %v320, %v328
        %v332 = vmul.f32 %v318, %v325
        %v333 = vmul.f32 %v317, %v329
        %v336 = vrot.slane %v332, 4
        %v337 = vrot.slane %v333, 4
        %340 = vst [vmem:[#allocation2] sm:$0xf0] %v336
        %341 = vst [vmem:[#allocation2 + $0x8] sm:$0xf0] %v337
        %342 = vrot.lane.b32.xlu0 %v283, 15
        %v343 = vpop.permute.xlu0 %342
        %344 = vrot.lane.b32.xlu0 %v285, 15
        %v345 = vpop.permute.xlu0 %344
        %vm346 = vcmp.lt.s32.totalorder %v292, 15
        %v347 = vsel %vm346, %v343, %v345
        %v348 = vsel %vm346, %v345, %v343
        %s349 = scalar_lea.vmem %s3, 4
        %v350 = vld [vmem:[%s349] sm:$0x3]
        %v352 = vlaneseq
        %v353 = vshrl.u32 %v352, 7
        %v354 = vsub.s32 0, %v353
        %v355 = vrot.slane %v350, %v354
        %v356 = vlaneseq
        %v357 = vshrl.u32 %v356, 7
        %v358 = vsub.s32 1, %v357
        %v359 = vrot.slane %v350, %v358
        %v362 = vmul.f32 %v348, %v355
        %v363 = vmul.f32 %v347, %v359
        %364 = vst [vmem:[#allocation2 + $0x10] sm:$0xf] %v362
        %365 = vst [vmem:[#allocation2 + $0x18] sm:$0xf] %v363
        %366 = vrot.lane.b32.xlu0 %v283, 1
        %v367 = vpop.permute.xlu0 %366
        %368 = vrot.lane.b32.xlu0 %v285, 1
        %v369 = vpop.permute.xlu0 %368
        %vm370 = vcmp.lt.s32.totalorder %v292, 1
        %v371 = vsel %vm370, %v367, %v369
        %v372 = vsel %vm370, %v369, %v367
        %s373 = scalar_lea.vmem %s3, 6
        %v374 = vld [vmem:[%s373] sm:$0x3]
        %v376 = vlaneseq
        %v377 = vshrl.u32 %v376, 7
        %v378 = vsub.s32 0, %v377
        %v379 = vrot.slane %v374, %v378
        %v380 = vlaneseq
        %v381 = vshrl.u32 %v380, 7
        %v382 = vsub.s32 1, %v381
        %v383 = vrot.slane %v374, %v382
        %v386 = vmul.f32 %v372, %v379
        %v387 = vmul.f32 %v371, %v383
        %v390 = vrot.slane %v386, 4
        %v391 = vrot.slane %v387, 4
        %394 = vst [vmem:[#allocation2 + $0x10] sm:$0xf0] %v390
        %395 = vst [vmem:[#allocation2 + $0x18] sm:$0xf0] %v391
        %s396 = scalar_lea.vmem %s3, 8
        %v397 = vld [vmem:[%s396] sm:$0x3]
        %v399 = vlaneseq
        %v400 = vshrl.u32 %v399, 7
        %v401 = vsub.s32 0, %v400
        %v402 = vrot.slane %v397, %v401
        %v403 = vlaneseq
        %v404 = vshrl.u32 %v403, 7
        %v405 = vsub.s32 1, %v404
        %v406 = vrot.slane %v397, %v405
        %v407 = vcombine.low %v402, %v406
        %v409 = vmul.f32 %v283, %v407
        %v411 = vcombine.high %v409, %v409
        %413 = vst [vmem:[#allocation2 + $0x20] sm:$0xf] %v409
        %414 = vst [vmem:[#allocation2 + $0x28] sm:$0xf] %v411
        %415 = vrot.lane.b32.xlu0 %v283, 127
        %v416 = vpop.permute.xlu0 %415
        %417 = vrot.lane.b32.xlu0 %v285, 127
        %v418 = vpop.permute.xlu0 %417
        %vm419 = vcmp.lt.s32.totalorder %v292, 127
        %v420 = vsel %vm419, %v416, %v418
        %v421 = vsel %vm419, %v418, %v416
        %s422 = scalar_lea.vmem %s3, 10
        %v423 = vld [vmem:[%s422] sm:$0x3]
        %v425 = vlaneseq
        %v426 = vshrl.u32 %v425, 7
        %v427 = vsub.s32 0, %v426
        %v428 = vrot.slane %v423, %v427
        %v429 = vlaneseq
        %v430 = vshrl.u32 %v429, 7
        %v431 = vsub.s32 1, %v430
        %v432 = vrot.slane %v423, %v431
        %v435 = vmul.f32 %v420, %v428
        %v436 = vmul.f32 %v421, %v432
        %v439 = vrot.slane %v435, 4
        %v440 = vrot.slane %v436, 4
        %443 = vst [vmem:[#allocation2 + $0x20] sm:$0xf0] %v439
        %444 = vst [vmem:[#allocation2 + $0x28] sm:$0xf0] %v440
        %445 = vrot.lane.b32.xlu0 %v283, 113
        %v446 = vpop.permute.xlu0 %445
        %447 = vrot.lane.b32.xlu0 %v285, 113
        %v448 = vpop.permute.xlu0 %447
        %vm449 = vcmp.lt.s32.totalorder %v292, 113
        %v450 = vsel %vm449, %v446, %v448
        %v451 = vsel %vm449, %v448, %v446
        %s452 = scalar_lea.vmem %s3, 12
        %v453 = vld [vmem:[%s452] sm:$0x3]
        %v455 = vlaneseq
        %v456 = vshrl.u32 %v455, 7
        %v457 = vsub.s32 0, %v456
        %v458 = vrot.slane %v453, %v457
        %v459 = vlaneseq
        %v460 = vshrl.u32 %v459, 7
        %v461 = vsub.s32 1, %v460
        %v462 = vrot.slane %v453, %v461
        %v465 = vmul.f32 %v450, %v458
        %v466 = vmul.f32 %v451, %v462
        %467 = vst [vmem:[#allocation2 + $0x30] sm:$0xf] %v465
        %468 = vst [vmem:[#allocation2 + $0x38] sm:$0xf] %v466
        %469 = vrot.lane.b32.xlu0 %v283, 112
        %v470 = vpop.permute.xlu0 %469
        %471 = vrot.lane.b32.xlu0 %v285, 112
        %v472 = vpop.permute.xlu0 %471
        %vm473 = vcmp.lt.s32.totalorder %v292, 112
        %v474 = vsel %vm473, %v470, %v472
        %v475 = vsel %vm473, %v472, %v470
        %s476 = scalar_lea.vmem %s3, 14
        %v477 = vld [vmem:[%s476] sm:$0x3]
        %v479 = vlaneseq
        %v480 = vshrl.u32 %v479, 7
        %v481 = vsub.s32 0, %v480
        %v482 = vrot.slane %v477, %v481
        %v483 = vlaneseq
        %v484 = vshrl.u32 %v483, 7
        %v485 = vsub.s32 1, %v484
        %v486 = vrot.slane %v477, %v485
        %v489 = vmul.f32 %v474, %v482
        %v490 = vmul.f32 %v475, %v486
        %v493 = vrot.slane %v489, 4
        %v494 = vrot.slane %v490, 4
        %497 = vst [vmem:[#allocation2 + $0x30] sm:$0xf0] %v493
        %498 = vst [vmem:[#allocation2 + $0x38] sm:$0xf0] %v494
        %499 = vrot.lane.b32.xlu0 %v283, 111
        %v500 = vpop.permute.xlu0 %499
        %501 = vrot.lane.b32.xlu0 %v285, 111
        %v502 = vpop.permute.xlu0 %501
        %vm503 = vcmp.lt.s32.totalorder %v292, 111
        %v504 = vsel %vm503, %v500, %v502
        %v505 = vsel %vm503, %v502, %v500
        %s506 = scalar_lea.vmem %s3, 16
        %v507 = vld [vmem:[%s506] sm:$0x3]
        %v509 = vlaneseq
        %v510 = vshrl.u32 %v509, 7
        %v511 = vsub.s32 0, %v510
        %v512 = vrot.slane %v507, %v511
        %v513 = vlaneseq
        %v514 = vshrl.u32 %v513, 7
        %v515 = vsub.s32 1, %v514
        %v516 = vrot.slane %v507, %v515
        %v519 = vmul.f32 %v504, %v512
        %v520 = vmul.f32 %v505, %v516
        %521 = vst [vmem:[#allocation2 + $0x40] sm:$0xf] %v519
        %522 = vst [vmem:[#allocation2 + $0x48] sm:$0xf] %v520
        %v523 = vld [vmem:[#allocation2] sm:$0xff]
        %v524 = vld [vmem:[#allocation2 + $0x8] sm:$0xff]
        %v525 = vld [vmem:[#allocation2 + $0x10] sm:$0xff]
        %v526 = vld [vmem:[#allocation2 + $0x18] sm:$0xff]
        %v527 = vld [vmem:[#allocation2 + $0x20] sm:$0xff]
        %v528 = vld [vmem:[#allocation2 + $0x28] sm:$0xff]
        %v529 = vld [vmem:[#allocation2 + $0x30] sm:$0xff]
        %v530 = vld [vmem:[#allocation2 + $0x38] sm:$0xff]
        %v531 = vld [vmem:[#allocation2 + $0x40] sm:$0xf]
        %v532 = vld [vmem:[#allocation2 + $0x48] sm:$0xf]
        %v533 = vld [vmem:[#allocation6] sm:$0xf]
        %v534 = vld [vmem:[%s2] sm:$0xf]
        %536 = vset.pattern.permute.xlu0 0
        %537 = vperm.xlu0 %536, %v534
        %v538 = vpop.permute.xlu0 %537
        %vm540 = vcmask 293888
        %v542 = vsel %vm540, %v533, 0
        %vm544 = vcmask 1043456
        %v546 = vsel %vm544, %v531, 0
        %v549 = vsel %vm544, %v532, 0
        %551 = vmatprep.subr.mxu0 %v524
        %552 = vmatpush1.msra.mxu0 %v523
        %553 = vmatprep.subr.mxu0 %v526
        %554 = vmatpush1.msra.mxu0 %v525
        %555 = vmatprep.subr.mxu0 %v528
        %556 = vmatpush1.msra.mxu0 %v527
        %557 = vmatprep.subr.mxu0 %v530
        %558 = vmatpush1.msra.mxu0 %v529
        %559 = vmatprep.subr.mxu0 %v549
        %560 = vmatpush1.msra.mxu0 %v546
        %561 = vmatprep.subr.mxu0 0.0
        %562 = vmatpush1.msra.mxu0 0.0
        %563 = vmatprep.subr.mxu0 0.0
        %564 = vmatpush1.msra.mxu0 0.0
        %565 = vmatprep.subr.mxu0 0.0
        %566 = vmatpush1.msra.mxu0 0.0
        %567 = vmatprep.subr.mxu0 0.0
        %568 = vmatpush1.msra.mxu0 0.0
        %569 = vmatprep.subr.mxu0 0.0
        %570 = vmatpush1.msra.mxu0 0.0
        %571 = vmatprep.subr.mxu0 0.0
        %572 = vmatpush1.msra.mxu0 0.0
        %573 = vmatprep.subr.mxu0 0.0
        %574 = vmatpush1.msra.mxu0 0.0
        %575 = vmatprep.subr.mxu0 0.0
        %576 = vmatpush1.msra.mxu0 0.0
        %577 = vmatprep.subr.mxu0 0.0
        %578 = vmatpush1.msra.mxu0 0.0
        %579 = vmatprep.subr.mxu0 0.0
        %580 = vmatpush1.msra.mxu0 0.0
        %581 = vmatprep.subr.mxu0 0.0
        %582 = vmatpush1.msra.mxu0 0.0
        %583 = vmatprep.subr.mxu0 0.0
        %584 = vmatpush1.msra.mxu0 0.0
        %585 = vmatprep.subr.mxu0 0.0
        %586 = vmatpush1.msra.mxu0 0.0
        %587 = vmatprep.subr.mxu0 0.0
        %588 = vmatpush1.msra.mxu0 0.0
        %589 = vmatprep.subr.mxu0 0.0
        %590 = vmatpush1.msra.mxu0 0.0
        %591 = vmatprep.subr.mxu0 0.0
        %592 = vmatpush1.msra.mxu0 0.0
        %593 = vmatprep.subr.mxu0 0.0
        %594 = vmatpush1.msra.mxu0 0.0
        %595 = vmatprep.subr.mxu0 0.0
        %596 = vmatpush1.msra.mxu0 0.0
        %597 = vmatprep.subr.mxu0 0.0
        %598 = vmatpush1.msra.mxu0 0.0
        %599 = vmatprep.subr.mxu0 0.0
        %600 = vmatpush1.msra.mxu0 0.0
        %601 = vmatprep.subr.mxu0 0.0
        %602 = vmatpush1.msra.mxu0 0.0
        %603 = vmatprep.subr.mxu0 0.0
        %604 = vmatpush1.msra.mxu0 0.0
        %605 = vmatprep.subr.mxu0 0.0
        %606 = vmatpush1.msra.mxu0 0.0
        %607 = vmatprep.subr.mxu0 0.0
        %608 = vmatpush1.msra.mxu0 0.0
        %609 = vmatprep.subr.mxu0 0.0
        %610 = vmatpush1.msra.mxu0 0.0
        %611 = vmatprep.subr.mxu0 0.0
        %612 = vmatpush1.msra.mxu0 0.0
        %613 = vmatprep.subr.mxu0 0.0
        %614 = vmatpush1.msra.mxu0 0.0
        %615 = vmatprep.mubr.f32.mxu0 0.0
        %616 = vmatmul.mubr.f32.gmra.mrb[0].mxu0 %v542
        %v617 = vpop.f32.mrb[0].mxu0
        %v618 = vadd.f32 %v538, %v617
        %v619 = vpop.f32.mrb[0].mxu0
        %v620 = vadd.f32 %v538, %v619
        %621 = vdwg.mxu0
        %vm622 = vcmp.ge.f32.partialorder %v618, 0.0
        %vm623 = vcmp.ge.f32.partialorder %v620, 0.0
        %v624 = vmul.f32 %v618, 0.01
        %v625 = vmul.f32 %v620, 0.01
        %v626 = vsel %vm622, %v618, %v624
        %v627 = vsel %vm623, %v620, %v625
        %628 = vrot.lane.b32.xlu0 %v626, 17
        %v629 = vpop.permute.xlu0 %628
        %630 = vrot.lane.b32.xlu0 %v627, 17
        %v631 = vpop.permute.xlu0 %630
        %v632 = vsel %vm293, %v629, %v631
        %v633 = vsel %vm293, %v631, %v629
        %v634 = vld [vmem:[%s3] sm:$0x3]
        %v636 = vlaneseq
        %v637 = vshrl.u32 %v636, 7
        %v638 = vsub.s32 0, %v637
        %v639 = vrot.slane %v634, %v638
        %v640 = vlaneseq
        %v641 = vshrl.u32 %v640, 7
        %v642 = vsub.s32 1, %v641
        %v643 = vrot.slane %v634, %v642
        %v646 = vmul.f32 %v633, %v639
        %v647 = vmul.f32 %v632, %v643
        %648 = vst [vmem:[#allocation2] sm:$0xf] %v646
        %649 = vst [vmem:[#allocation2 + $0x8] sm:$0xf] %v647
        %650 = vrot.lane.b32.xlu0 %v626, 16
        %v651 = vpop.permute.xlu0 %650
        %652 = vrot.lane.b32.xlu0 %v627, 16
        %v653 = vpop.permute.xlu0 %652
        %v654 = vsel %vm316, %v651, %v653
        %v655 = vsel %vm316, %v653, %v651
        %v656 = vld [vmem:[%s319] sm:$0x3]
        %v658 = vlaneseq
        %v659 = vshrl.u32 %v658, 7
        %v660 = vsub.s32 0, %v659
        %v661 = vrot.slane %v656, %v660
        %v662 = vlaneseq
        %v663 = vshrl.u32 %v662, 7
        %v664 = vsub.s32 1, %v663
        %v665 = vrot.slane %v656, %v664
        %v668 = vmul.f32 %v655, %v661
        %v669 = vmul.f32 %v654, %v665
        %v672 = vrot.slane %v668, 4
        %v673 = vrot.slane %v669, 4
        %676 = vst [vmem:[#allocation2] sm:$0xf0] %v672
        %677 = vst [vmem:[#allocation2 + $0x8] sm:$0xf0] %v673
        %678 = vrot.lane.b32.xlu0 %v626, 15
        %v679 = vpop.permute.xlu0 %678
        %680 = vrot.lane.b32.xlu0 %v627, 15
        %v681 = vpop.permute.xlu0 %680
        %v682 = vsel %vm346, %v679, %v681
        %v683 = vsel %vm346, %v681, %v679
        %v684 = vld [vmem:[%s349] sm:$0x3]
        %v686 = vlaneseq
        %v687 = vshrl.u32 %v686, 7
        %v688 = vsub.s32 0, %v687
        %v689 = vrot.slane %v684, %v688
        %v690 = vlaneseq
        %v691 = vshrl.u32 %v690, 7
        %v692 = vsub.s32 1, %v691
        %v693 = vrot.slane %v684, %v692
        %v696 = vmul.f32 %v683, %v689
        %v697 = vmul.f32 %v682, %v693
        %698 = vst [vmem:[#allocation2 + $0x10] sm:$0xf] %v696
        %699 = vst [vmem:[#allocation2 + $0x18] sm:$0xf] %v697
        %700 = vrot.lane.b32.xlu0 %v626, 1
        %v701 = vpop.permute.xlu0 %700
        %702 = vrot.lane.b32.xlu0 %v627, 1
        %v703 = vpop.permute.xlu0 %702
        %v704 = vsel %vm370, %v701, %v703
        %v705 = vsel %vm370, %v703, %v701
        %v706 = vld [vmem:[%s373] sm:$0x3]
        %v708 = vlaneseq
        %v709 = vshrl.u32 %v708, 7
        %v710 = vsub.s32 0, %v709
        %v711 = vrot.slane %v706, %v710
        %v712 = vlaneseq
        %v713 = vshrl.u32 %v712, 7
        %v714 = vsub.s32 1, %v713
        %v715 = vrot.slane %v706, %v714
        %v718 = vmul.f32 %v705, %v711
        %v719 = vmul.f32 %v704, %v715
        %v722 = vrot.slane %v718, 4
        %v723 = vrot.slane %v719, 4
        %726 = vst [vmem:[#allocation2 + $0x10] sm:$0xf0] %v722
        %727 = vst [vmem:[#allocation2 + $0x18] sm:$0xf0] %v723
        %v728 = vld [vmem:[%s396] sm:$0x3]
        %v730 = vlaneseq
        %v731 = vshrl.u32 %v730, 7
        %v732 = vsub.s32 0, %v731
        %v733 = vrot.slane %v728, %v732
        %v734 = vlaneseq
        %v735 = vshrl.u32 %v734, 7
        %v736 = vsub.s32 1, %v735
        %v737 = vrot.slane %v728, %v736
        %v740 = vmul.f32 %v626, %v733
        %v741 = vmul.f32 %v627, %v737
        %742 = vst [vmem:[#allocation2 + $0x20] sm:$0xf] %v740
        %743 = vst [vmem:[#allocation2 + $0x28] sm:$0xf] %v741
        %744 = vrot.lane.b32.xlu0 %v626, 127
        %v745 = vpop.permute.xlu0 %744
        %746 = vrot.lane.b32.xlu0 %v627, 127
        %v747 = vpop.permute.xlu0 %746
        %v748 = vsel %vm419, %v745, %v747
        %v749 = vsel %vm419, %v747, %v745
        %v750 = vld [vmem:[%s422] sm:$0x3]
        %v752 = vlaneseq
        %v753 = vshrl.u32 %v752, 7
        %v754 = vsub.s32 0, %v753
        %v755 = vrot.slane %v750, %v754
        %v756 = vlaneseq
        %v757 = vshrl.u32 %v756, 7
        %v758 = vsub.s32 1, %v757
        %v759 = vrot.slane %v750, %v758
        %v762 = vmul.f32 %v748, %v755
        %v763 = vmul.f32 %v749, %v759
        %v766 = vrot.slane %v762, 4
        %v767 = vrot.slane %v763, 4
        %770 = vst [vmem:[#allocation2 + $0x20] sm:$0xf0] %v766
        %771 = vst [vmem:[#allocation2 + $0x28] sm:$0xf0] %v767
        %772 = vrot.lane.b32.xlu0 %v626, 113
        %v773 = vpop.permute.xlu0 %772
        %774 = vrot.lane.b32.xlu0 %v627, 113
        %v775 = vpop.permute.xlu0 %774
        %v776 = vsel %vm449, %v773, %v775
        %v777 = vsel %vm449, %v775, %v773
        %v778 = vld [vmem:[%s452] sm:$0x3]
        %v780 = vlaneseq
        %v781 = vshrl.u32 %v780, 7
        %v782 = vsub.s32 0, %v781
        %v783 = vrot.slane %v778, %v782
        %v784 = vlaneseq
        %v785 = vshrl.u32 %v784, 7
        %v786 = vsub.s32 1, %v785
        %v787 = vrot.slane %v778, %v786
        %v790 = vmul.f32 %v776, %v783
        %v791 = vmul.f32 %v777, %v787
        %792 = vst [vmem:[#allocation2 + $0x30] sm:$0xf] %v790
        %793 = vst [vmem:[#allocation2 + $0x38] sm:$0xf] %v791
        %794 = vrot.lane.b32.xlu0 %v626, 112
        %v795 = vpop.permute.xlu0 %794
        %796 = vrot.lane.b32.xlu0 %v627, 112
        %v797 = vpop.permute.xlu0 %796
        %v798 = vsel %vm473, %v795, %v797
        %v799 = vsel %vm473, %v797, %v795
        %v800 = vld [vmem:[%s476] sm:$0x3]
        %v802 = vlaneseq
        %v803 = vshrl.u32 %v802, 7
        %v804 = vsub.s32 0, %v803
        %v805 = vrot.slane %v800, %v804
        %v806 = vlaneseq
        %v807 = vshrl.u32 %v806, 7
        %v808 = vsub.s32 1, %v807
        %v809 = vrot.slane %v800, %v808
        %v812 = vmul.f32 %v798, %v805
        %v813 = vmul.f32 %v799, %v809
        %v816 = vrot.slane %v812, 4
        %v817 = vrot.slane %v813, 4
        %820 = vst [vmem:[#allocation2 + $0x30] sm:$0xf0] %v816
        %821 = vst [vmem:[#allocation2 + $0x38] sm:$0xf0] %v817
        %822 = vrot.lane.b32.xlu0 %v626, 111
        %v823 = vpop.permute.xlu0 %822
        %824 = vrot.lane.b32.xlu0 %v627, 111
        %v825 = vpop.permute.xlu0 %824
        %v826 = vsel %vm503, %v823, %v825
        %v827 = vsel %vm503, %v825, %v823
        %v828 = vld [vmem:[%s506] sm:$0x3]
        %v830 = vlaneseq
        %v831 = vshrl.u32 %v830, 7
        %v832 = vsub.s32 0, %v831
        %v833 = vrot.slane %v828, %v832
        %v834 = vlaneseq
        %v835 = vshrl.u32 %v834, 7
        %v836 = vsub.s32 1, %v835
        %v837 = vrot.slane %v828, %v836
        %v840 = vmul.f32 %v826, %v833
        %v841 = vmul.f32 %v827, %v837
        %842 = vst [vmem:[#allocation2 + $0x40] sm:$0xf] %v840
        %843 = vst [vmem:[#allocation2 + $0x48] sm:$0xf] %v841
        %v844 = vld [vmem:[#allocation2] sm:$0xff]
        %v845 = vld [vmem:[#allocation2 + $0x8] sm:$0xff]
        %v846 = vld [vmem:[#allocation2 + $0x10] sm:$0xff]
        %v847 = vld [vmem:[#allocation2 + $0x18] sm:$0xff]
        %v848 = vld [vmem:[#allocation2 + $0x20] sm:$0xff]
        %v849 = vld [vmem:[#allocation2 + $0x28] sm:$0xff]
        %v850 = vld [vmem:[#allocation2 + $0x30] sm:$0xff]
        %v851 = vld [vmem:[#allocation2 + $0x38] sm:$0xff]
        %v852 = vld [vmem:[#allocation2 + $0x40] sm:$0xf]
        %v853 = vld [vmem:[#allocation2 + $0x48] sm:$0xf]
        %v854 = vld [vmem:[%s4] sm:$0xf]
        %v855 = vld [vmem:[%s5] sm:$0xf]
        %857 = vset.pattern.permute.xlu0 0
        %858 = vperm.xlu0 %857, %v855
        %v859 = vpop.permute.xlu0 %858
        %v862 = vsel %vm540, %v854, 0
        %v865 = vsel %vm544, %v852, 0
        %v868 = vsel %vm544, %v853, 0
        %870 = vmatprep.subr.mxu0 %v845
        %871 = vmatpush1.msra.mxu0 %v844
        %872 = vmatprep.subr.mxu0 %v847
        %873 = vmatpush1.msra.mxu0 %v846
        %874 = vmatprep.subr.mxu0 %v849
        %875 = vmatpush1.msra.mxu0 %v848
        %876 = vmatprep.subr.mxu0 %v851
        %877 = vmatpush1.msra.mxu0 %v850
        %878 = vmatprep.subr.mxu0 %v868
        %879 = vmatpush1.msra.mxu0 %v865
        %880 = vmatprep.subr.mxu0 0.0
        %881 = vmatpush1.msra.mxu0 0.0
        %882 = vmatprep.subr.mxu0 0.0
        %883 = vmatpush1.msra.mxu0 0.0
        %884 = vmatprep.subr.mxu0 0.0
        %885 = vmatpush1.msra.mxu0 0.0
        %886 = vmatprep.subr.mxu0 0.0
        %887 = vmatpush1.msra.mxu0 0.0
        %888 = vmatprep.subr.mxu0 0.0
        %889 = vmatpush1.msra.mxu0 0.0
        %890 = vmatprep.subr.mxu0 0.0
        %891 = vmatpush1.msra.mxu0 0.0
        %892 = vmatprep.subr.mxu0 0.0
        %893 = vmatpush1.msra.mxu0 0.0
        %894 = vmatprep.subr.mxu0 0.0
        %895 = vmatpush1.msra.mxu0 0.0
        %896 = vmatprep.subr.mxu0 0.0
        %897 = vmatpush1.msra.mxu0 0.0
        %898 = vmatprep.subr.mxu0 0.0
        %899 = vmatpush1.msra.mxu0 0.0
        %900 = vmatprep.subr.mxu0 0.0
        %901 = vmatpush1.msra.mxu0 0.0
        %902 = vmatprep.subr.mxu0 0.0
        %903 = vmatpush1.msra.mxu0 0.0
        %904 = vmatprep.subr.mxu0 0.0
        %905 = vmatpush1.msra.mxu0 0.0
        %906 = vmatprep.subr.mxu0 0.0
        %907 = vmatpush1.msra.mxu0 0.0
        %908 = vmatprep.subr.mxu0 0.0
        %909 = vmatpush1.msra.mxu0 0.0
        %910 = vmatprep.subr.mxu0 0.0
        %911 = vmatpush1.msra.mxu0 0.0
        %912 = vmatprep.subr.mxu0 0.0
        %913 = vmatpush1.msra.mxu0 0.0
        %914 = vmatprep.subr.mxu0 0.0
        %915 = vmatpush1.msra.mxu0 0.0
        %916 = vmatprep.subr.mxu0 0.0
        %917 = vmatpush1.msra.mxu0 0.0
        %918 = vmatprep.subr.mxu0 0.0
        %919 = vmatpush1.msra.mxu0 0.0
        %920 = vmatprep.subr.mxu0 0.0
        %921 = vmatpush1.msra.mxu0 0.0
        %922 = vmatprep.subr.mxu0 0.0
        %923 = vmatpush1.msra.mxu0 0.0
        %924 = vmatprep.subr.mxu0 0.0
        %925 = vmatpush1.msra.mxu0 0.0
        %926 = vmatprep.subr.mxu0 0.0
        %927 = vmatpush1.msra.mxu0 0.0
        %928 = vmatprep.subr.mxu0 0.0
        %929 = vmatpush1.msra.mxu0 0.0
        %930 = vmatprep.subr.mxu0 0.0
        %931 = vmatpush1.msra.mxu0 0.0
        %932 = vmatprep.subr.mxu0 0.0
        %933 = vmatpush1.msra.mxu0 0.0
        %934 = vmatprep.mubr.f32.mxu0 0.0
        %935 = vmatmul.mubr.f32.gmra.mrb[0].mxu0 %v862
        %v936 = vpop.f32.mrb[0].mxu0
        %v937 = vadd.f32 %v859, %v936
        %v938 = vpop.f32.mrb[0].mxu0
        %v939 = vadd.f32 %v859, %v938
        %940 = vdwg.mxu0
        %vm941 = vcmp.ge.f32.partialorder %v937, 0.0
        %vm942 = vcmp.ge.f32.partialorder %v939, 0.0
        %v943 = vmul.f32 %v937, 0.01
        %v944 = vmul.f32 %v939, 0.01
        %v945 = vsel %vm941, %v937, %v943
        %v946 = vsel %vm942, %v939, %v944
        %v949 = vcombine.low %v945, %v946
        %951 = vst [vmem:[%s280] sm:$0xff] %v949
        %s952 = sand.u32 %s163, 1
        %s953 = scalar_lea.sflag [#allocation5], %s952
        %s954 = sand.u32 %s163, 1
        %s955 = smul.addr %s954, 8
        %s956 = scalar_lea.vmem [#allocation8], %s955
        // Predicated region
        $region53: #{tpu_custom_call.1} parent=43 // pred_check
          %p957 = pneg %p173
        $region54: #{tpu_custom_call.1} parent=43 // pred_check_branch
          %959 = sbr.rel (%p957) target = $region56
        $region55: #{tpu_custom_call.1} parent=43 // pred_region
          %s960 = smul.u32 2, %s24
          %s962 = ssub.s32 128, 128
          %963 = vsyncadd %s953, %s962
          %s964 = smul.addr %s960, 64
          %s965 = scalar_lea.hbm %s6, %s964
          %s967 = sshll.u32 %s956, 4
          %s968 = int_to_ptr.vmem [resolvable:$true] %s967
          %970 = dma.vmem_to_hbm [thread:$0]  %s968, 128, %s965, %s953
        $region56: #{tpu_custom_call.1} parent=43 // pred_fallthru
          _
      $region44: #{tpu_custom_call.1} parent=5 // pred_fallthru
        _
      %p971 = scmp.le.s32.totalorder 2, %s19
      // Predicated region
      $region57: #{tpu_custom_call.1} parent=5 // pred_check
        %p972 = pneg %p971
      $region58: #{tpu_custom_call.1} parent=5 // pred_check_branch
        %974 = sbr.rel (%p972) target = $region60
      $region59: #{tpu_custom_call.1} parent=5 // pred_region
        %s975 = ssub.s32 %s19, 2
        // Predicated region
        $region61: #{tpu_custom_call.1} parent=59 // pred_check
          %p976 = pneg %p179
        $region62: #{tpu_custom_call.1} parent=59 // pred_check_branch
          %978 = sbr.rel (%p976) target = $region64
        $region63: #{tpu_custom_call.1} parent=59 // pred_region
          %s979 = sand.u32 %s164, 1
          %s980 = scalar_lea.sflag [#allocation5], %s979
          %s981 = sand.u32 %s164, 1
          %s982 = smul.addr %s981, 8
          %s983 = scalar_lea.vmem [#allocation8], %s982
          %984 = dma.done %s980, 128
        $region64: #{tpu_custom_call.1} parent=59 // pred_fallthru
          _
      $region60: #{tpu_custom_call.1} parent=5 // pred_fallthru
        _
    $region6: #{tpu_custom_call.1} parent=1 // loop_footer
      %s23 = sadd.s32 1, %s19
    $region7: #{tpu_custom_call.1} parent=1 // loop_footer_branch
      %18 = sbr.rel target = $region3
    $region8: #{tpu_custom_call.1} parent=1 // loop_exit
      _
    %985 = vsyncpa [#allocation4], 1
    %s986 = scalar_lea.sflag [#allocation4], 1
    %987 = vsyncpa %s986, 1
    %988 = vsyncpa [#allocation7], 1
    %989 = vsyncpa [#allocation5], 1
    %s990 = scalar_lea.sflag [#allocation5], 1
    %991 = vsyncpa %s990, 1

</llo_original>
